<compile_context>
chip_gen: v5e
topology: v5e:2x2
jax: 0.10.0
libtpu: 0.0.40
codegen_flags: <defaults>
</compile_context>

<pallas_src>
import jax
import jax.numpy as jnp
import numpy as np
from jax.experimental import pallas as pl
from jax.experimental.pallas import tpu as pltpu


def _round_up(n, m):
    return ((n + m - 1) // m) * m


def mlp_kernel(x_ref, w1_ref, b1_ref, w2_ref, b2_ref, w3_ref, b3_ref, o_ref):
    # Fused 3-layer MLP for one batch tile. bf16 operands on the MXU with f32
    # accumulation; biases/activations accumulate in f32; ReLU is a VPU max.
    x = x_ref[...]
    h1 = jnp.dot(x, w1_ref[...], preferred_element_type=jnp.float32) + b1_ref[...]
    h1 = jnp.maximum(h1, 0.0)
    h2 = jnp.dot(h1.astype(w2_ref.dtype), w2_ref[...],
                 preferred_element_type=jnp.float32) + b2_ref[...]
    h2 = jnp.maximum(h2, 0.0)
    h3 = jnp.dot(h2.astype(w3_ref.dtype), w3_ref[...],
                 preferred_element_type=jnp.float32) + b3_ref[...]
    o_ref[...] = jnp.maximum(h3, 0.0).astype(o_ref.dtype)


def mlp_forward(x, params, *, batch_tile=512, compute_dtype=jnp.bfloat16):
    """x: (B, 784) float32. params: (w1, b1, w2, b2, w3, b3) with
    w1:(784,200) b1:(1,200) w2:(200,200) b2:(1,200) w3:(200,10) b3:(1,10)."""
    w1, b1, w2, b2, w3, b3 = params
    B, D_in = x.shape
    D_h = w1.shape[1]
    D_out = w3.shape[1]

    # Lane-dense padded feature dims (zero padding is numerically exact).
    D_in_p = _round_up(D_in, 128)    # 784 -> 896
    D_h_p = _round_up(D_h, 128)      # 200 -> 256
    D_out_p = _round_up(D_out, 128)  # 10  -> 128

    # Batch tile: large by default, clamped for small batches; multiple of 8
    # (f32 sublanes). Batch is zero-padded up to a multiple of the tile.
    bt = _round_up(min(batch_tile, _round_up(B, 8)), 8)
    B_p = _round_up(B, bt)

    f32 = jnp.float32
    xp = jnp.pad(x, ((0, B_p - B), (0, D_in_p - D_in))).astype(compute_dtype)
    w1p = jnp.pad(w1, ((0, D_in_p - D_in), (0, D_h_p - D_h))).astype(compute_dtype)
    w2p = jnp.pad(w2, ((0, D_h_p - D_h), (0, D_h_p - D_h))).astype(compute_dtype)
    w3p = jnp.pad(w3, ((0, D_h_p - D_h), (0, D_out_p - D_out))).astype(compute_dtype)
    b1p = jnp.pad(b1, ((0, 0), (0, D_h_p - D_h))).astype(f32)
    b2p = jnp.pad(b2, ((0, 0), (0, D_h_p - D_h))).astype(f32)
    b3p = jnp.pad(b3, ((0, 0), (0, D_out_p - D_out))).astype(f32)

    grid = (B_p // bt,)

    # Weights/biases are small (< 1 MiB total in bf16): full-extent blocks with a
    # constant index_map, so they stay resident across grid steps; only the
    # batch dimension is tiled.
    in_specs = [
        pl.BlockSpec((bt, D_in_p), lambda i: (i, 0)),      # x tile
        pl.BlockSpec((D_in_p, D_h_p), lambda i: (0, 0)),   # w1
        pl.BlockSpec((1, D_h_p), lambda i: (0, 0)),        # b1
        pl.BlockSpec((D_h_p, D_h_p), lambda i: (0, 0)),    # w2
        pl.BlockSpec((1, D_h_p), lambda i: (0, 0)),        # b2
        pl.BlockSpec((D_h_p, D_out_p), lambda i: (0, 0)),  # w3
        pl.BlockSpec((1, D_out_p), lambda i: (0, 0)),      # b3
    ]
    out_spec = pl.BlockSpec((bt, D_out_p), lambda i: (i, 0))

    out_p = pl.pallas_call(
        mlp_kernel,
        out_shape=jax.ShapeDtypeStruct((B_p, D_out_p), jnp.float32),
        grid_spec=pltpu.PrefetchScalarGridSpec(
            num_scalar_prefetch=0,
            grid=grid,
            in_specs=in_specs,
            out_specs=out_spec,
        ),
        compiler_params=pltpu.CompilerParams(
            # batch axis is independent -> megacore-shardable on v7x
            dimension_semantics=("parallel",),
        ),
    )(xp, w1p, b1p, w2p, b2p, w3p, b3p)

    # Slice away batch + output-lane padding (padded columns are exactly 0).
    return out_p[:B, :D_out]


def init_params(key):
    """Deterministic init mirroring PyTorch nn.Linear default:
    U(-1/sqrt(fan_in), 1/sqrt(fan_in)) for both weight and bias."""
    def linear(key, fan_in, fan_out):
        kw, kb = jax.random.split(key)
        bound = 1.0 / np.sqrt(fan_in)
        w = jax.random.uniform(kw, (fan_in, fan_out), jnp.float32, -bound, bound)
        b = jax.random.uniform(kb, (1, fan_out), jnp.float32, -bound, bound)
        return w, b

    k1, k2, k3 = jax.random.split(key, 3)
    w1, b1 = linear(k1, 784, 200)
    w2, b2 = linear(k2, 200, 200)
    w3, b3 = linear(k3, 200, 10)
    return w1, b1, w2, b2, w3, b3


def mlp_reference(x, params, compute_dtype=jnp.bfloat16):
    """Reference with the same bf16 operand rounding as the kernel (f32 accum)."""
    w1, b1, w2, b2, w3, b3 = params
    f32 = jnp.float32
    c = lambda a: a.astype(compute_dtype).astype(f32)
    h = jnp.maximum(c(x) @ c(w1) + b1, 0.0)
    h = jnp.maximum(c(h) @ c(w2) + b2, 0.0)
    h = jnp.maximum(c(h) @ c(w3) + b3, 0.0)
    return h


if __name__ == "__main__":
    key = jax.random.PRNGKey(0)
    kx, kp = jax.random.split(key)

    B = 32
    x = jax.random.normal(kx, (B, 784), dtype=jnp.float32)
    params = init_params(kp)

    out = mlp_forward(x, params)
    out = jax.block_until_ready(out)
    assert out.shape == (B, 10)

    ref = mlp_reference(x, params)
    np.testing.assert_allclose(np.asarray(out), np.asarray(ref), rtol=1e-3, atol=1e-3)

    print("KERNEL_OK")
</pallas_src>

<mosaic_0001>
module attributes {stable_mosaic.version = 11 : i64} {
  func.func @mlp_kernel(%arg0: i32, %arg1: memref<32x896xbf16, #tpu.memory_space<vmem>>, %arg2: memref<896x256xbf16, #tpu.memory_space<vmem>>, %arg3: memref<1x256xf32, #tpu.memory_space<vmem>>, %arg4: memref<256x256xbf16, #tpu.memory_space<vmem>>, %arg5: memref<1x256xf32, #tpu.memory_space<vmem>>, %arg6: memref<256x128xbf16, #tpu.memory_space<vmem>>, %arg7: memref<1x128xf32, #tpu.memory_space<vmem>>, %arg8: memref<32x128xf32, #tpu.memory_space<vmem>>) attributes {dimension_semantics = [#tpu.dimension_semantics<parallel>], iteration_bounds = array<i64: 1>, scalar_prefetch = 0 : i64, scratch_operands = 0 : i64, tpu.core_type = #tpu.core_type<tc>, window_params = [{transform_indices = @transform_0, window_bounds = array<i64: 32, 896>}, {pipeline_mode = #tpu.pipeline_mode<synchronous>, transform_indices = @transform_1, window_bounds = array<i64: 896, 256>}, {pipeline_mode = #tpu.pipeline_mode<synchronous>, transform_indices = @transform_2, window_bounds = array<i64: 1, 256>}, {pipeline_mode = #tpu.pipeline_mode<synchronous>, transform_indices = @transform_3, window_bounds = array<i64: 256, 256>}, {pipeline_mode = #tpu.pipeline_mode<synchronous>, transform_indices = @transform_4, window_bounds = array<i64: 1, 256>}, {pipeline_mode = #tpu.pipeline_mode<synchronous>, transform_indices = @transform_5, window_bounds = array<i64: 256, 128>}, {pipeline_mode = #tpu.pipeline_mode<synchronous>, transform_indices = @transform_6, window_bounds = array<i64: 1, 128>}, {transform_indices = @transform_7, window_bounds = array<i64: 32, 128>}]} {
    %c0 = arith.constant 0 : index
    %c0_0 = arith.constant 0 : index
    %0 = vector.load %arg1[%c0, %c0_0] : memref<32x896xbf16, #tpu.memory_space<vmem>>, vector<32x896xbf16>
    %c0_1 = arith.constant 0 : index
    %c0_2 = arith.constant 0 : index
    %1 = vector.load %arg2[%c0_1, %c0_2] : memref<896x256xbf16, #tpu.memory_space<vmem>>, vector<896x256xbf16>
    %cst = arith.constant dense<0.000000e+00> : vector<32x256xf32>
    %2 = tpu.matmul %0, %1, %cst {dimension_numbers = #tpu.dot_dimension_numbers<[1], [0], [0], [1], [0, 0, 1, 1], [], []>} : vector<32x896xbf16>, vector<896x256xbf16>, vector<32x256xf32> -> vector<32x256xf32>
    %c0_3 = arith.constant 0 : index
    %c0_4 = arith.constant 0 : index
    %3 = vector.load %arg3[%c0_3, %c0_4] : memref<1x256xf32, #tpu.memory_space<vmem>>, vector<1x256xf32>
    %4 = vector.broadcast %3 : vector<1x256xf32> to vector<32x256xf32>
    %5 = arith.addf %2, %4 : vector<32x256xf32>
    %cst_5 = arith.constant 0.000000e+00 : f32
    %6 = vector.broadcast %cst_5 : f32 to vector<32x256xf32>
    %7 = arith.maximumf %5, %6 : vector<32x256xf32>
    %8 = arith.truncf %7 : vector<32x256xf32> to vector<32x256xbf16>
    %c0_6 = arith.constant 0 : index
    %c0_7 = arith.constant 0 : index
    %9 = vector.load %arg4[%c0_6, %c0_7] : memref<256x256xbf16, #tpu.memory_space<vmem>>, vector<256x256xbf16>
    %cst_8 = arith.constant dense<0.000000e+00> : vector<32x256xf32>
    %10 = tpu.matmul %8, %9, %cst_8 {dimension_numbers = #tpu.dot_dimension_numbers<[1], [0], [0], [1], [0, 0, 1, 1], [], []>} : vector<32x256xbf16>, vector<256x256xbf16>, vector<32x256xf32> -> vector<32x256xf32>
    %c0_9 = arith.constant 0 : index
    %c0_10 = arith.constant 0 : index
    %11 = vector.load %arg5[%c0_9, %c0_10] : memref<1x256xf32, #tpu.memory_space<vmem>>, vector<1x256xf32>
    %12 = vector.broadcast %11 : vector<1x256xf32> to vector<32x256xf32>
    %13 = arith.addf %10, %12 : vector<32x256xf32>
    %cst_11 = arith.constant 0.000000e+00 : f32
    %14 = vector.broadcast %cst_11 : f32 to vector<32x256xf32>
    %15 = arith.maximumf %13, %14 : vector<32x256xf32>
    %16 = arith.truncf %15 : vector<32x256xf32> to vector<32x256xbf16>
    %c0_12 = arith.constant 0 : index
    %c0_13 = arith.constant 0 : index
    %17 = vector.load %arg6[%c0_12, %c0_13] : memref<256x128xbf16, #tpu.memory_space<vmem>>, vector<256x128xbf16>
    %cst_14 = arith.constant dense<0.000000e+00> : vector<32x128xf32>
    %18 = tpu.matmul %16, %17, %cst_14 {dimension_numbers = #tpu.dot_dimension_numbers<[1], [0], [0], [1], [0, 0, 1, 1], [], []>} : vector<32x256xbf16>, vector<256x128xbf16>, vector<32x128xf32> -> vector<32x128xf32>
    %c0_15 = arith.constant 0 : index
    %c0_16 = arith.constant 0 : index
    %19 = vector.load %arg7[%c0_15, %c0_16] : memref<1x128xf32, #tpu.memory_space<vmem>>, vector<1x128xf32>
    %20 = vector.broadcast %19 : vector<1x128xf32> to vector<32x128xf32>
    %21 = arith.addf %18, %20 : vector<32x128xf32>
    %cst_17 = arith.constant 0.000000e+00 : f32
    %22 = vector.broadcast %cst_17 : f32 to vector<32x128xf32>
    %23 = arith.maximumf %21, %22 : vector<32x128xf32>
    %c0_18 = arith.constant 0 : index
    %c0_19 = arith.constant 0 : index
    %24 = vector.load %arg8[%c0_18, %c0_19] : memref<32x128xf32, #tpu.memory_space<vmem>>, vector<32x128xf32>
    tpu.vector_store %arg8[%c0_18, %c0_19], %23 {strides = array<i32>} : memref<32x128xf32, #tpu.memory_space<vmem>>, vector<32x128xf32>,
    return
  }
  func.func @transform_0(%arg0: i32) -> (i32, i32) {
    %c0_i32 = arith.constant 0 : i32
    %c0_i32_0 = arith.constant 0 : i32
    return %arg0, %c0_i32 : i32, i32
  }
  func.func @transform_1(%arg0: i32) -> (i32, i32) {
    %c0_i32 = arith.constant 0 : i32
    %c0_i32_0 = arith.constant 0 : i32
    %c0_i32_1 = arith.constant 0 : i32
    return %c0_i32, %c0_i32_0 : i32, i32
  }
  func.func @transform_2(%arg0: i32) -> (i32, i32) {
    %c0_i32 = arith.constant 0 : i32
    %c0_i32_0 = arith.constant 0 : i32
    %c0_i32_1 = arith.constant 0 : i32
    return %c0_i32, %c0_i32_0 : i32, i32
  }
  func.func @transform_3(%arg0: i32) -> (i32, i32) {
    %c0_i32 = arith.constant 0 : i32
    %c0_i32_0 = arith.constant 0 : i32
    %c0_i32_1 = arith.constant 0 : i32
    return %c0_i32, %c0_i32_0 : i32, i32
  }
  func.func @transform_4(%arg0: i32) -> (i32, i32) {
    %c0_i32 = arith.constant 0 : i32
    %c0_i32_0 = arith.constant 0 : i32
    %c0_i32_1 = arith.constant 0 : i32
    return %c0_i32, %c0_i32_0 : i32, i32
  }
  func.func @transform_5(%arg0: i32) -> (i32, i32) {
    %c0_i32 = arith.constant 0 : i32
    %c0_i32_0 = arith.constant 0 : i32
    %c0_i32_1 = arith.constant 0 : i32
    return %c0_i32, %c0_i32_0 : i32, i32
  }
  func.func @transform_6(%arg0: i32) -> (i32, i32) {
    %c0_i32 = arith.constant 0 : i32
    %c0_i32_0 = arith.constant 0 : i32
    %c0_i32_1 = arith.constant 0 : i32
    return %c0_i32, %c0_i32_0 : i32, i32
  }
  func.func @transform_7(%arg0: i32) -> (i32, i32) {
    %c0_i32 = arith.constant 0 : i32
    %c0_i32_0 = arith.constant 0 : i32
    return %arg0, %c0_i32 : i32, i32
  }
}

</mosaic_0001>

<llo_original>
// kernel: tpu_custom_call.1
$region0: #{tpu_custom_call.1}
  #allocation0 [shape = 'u32[]', space=smem, size = 0x4, offset = 0x4, fixed_abs, tag = 'smem constant byte address 0x4 - core index']
  #allocation1 [shape = 'u32[72,128]{1,0:T(1,128)}', space=vmem, size = 0x9000, scoped, tag = 'internal scratch']
  %s0 = inlined_call_operand.hbm [shape: bf16[32,896], index: 0, kind: input, shape index: {}]
  %s1 = inlined_call_operand.hbm [shape: bf16[896,256], index: 1, kind: input, shape index: {}]
  %s2 = inlined_call_operand.hbm [shape: f32[1,256], index: 2, kind: input, shape index: {}]
  %s3 = inlined_call_operand.hbm [shape: bf16[256,256], index: 3, kind: input, shape index: {}]
  %s4 = inlined_call_operand.vmem [shape: f32[1,256], index: 4, kind: input, shape index: {}]
  %s5 = inlined_call_operand.hbm [shape: bf16[256,128], index: 5, kind: input, shape index: {}]
  %s6 = inlined_call_operand.vmem [shape: f32[1,128], index: 6, kind: input, shape index: {}]
  %s7 = inlined_call_operand.hbm [shape: f32[32,128], index: 7, kind: output, shape index: {}]
  %s8 = sld [smem:[#allocation0]]
  $region58: #{tpu_custom_call.1} parent=0
    _
  %s10 = ssub.s32 1, %s8
  %s11 = scalar_select 0, %s10, %s8
  $region1: #{tpu_custom_call.1} parent=0
    #allocation2 [shape = 'u8[57344]{0}', space=vmem, size = 0xe000, scoped, tag = 'input window, operand 0, single buffered']
    #allocation3 [shape = 's32[1]{0}', space=sflag, size = 0x4, scoped, tag = 'scoped memory for tpu_custom_call.1']
    #allocation4 [shape = 's32[1]{0}', space=sflag, size = 0x4, scoped, tag = 'scoped memory for tpu_custom_call.1']
    #allocation5 [shape = 'u8[458752]{0}', space=vmem, size = 0x70000, scoped, tag = 'input window, operand 1, single buffered']
    #allocation6 [shape = 's32[1]{0}', space=sflag, size = 0x4, scoped, tag = 'scoped memory for tpu_custom_call.1']
    #allocation7 [shape = 'u8[1024]{0}', space=vmem, size = 0x400, scoped, tag = 'input window, operand 2, single buffered']
    #allocation8 [shape = 'u8[131072]{0}', space=vmem, size = 0x20000, scoped, tag = 'input window, operand 3, single buffered']
    #allocation9 [shape = 's32[1]{0}', space=sflag, size = 0x4, scoped, tag = 'scoped memory for tpu_custom_call.1']
    #allocation10 [shape = 'u8[65536]{0}', space=vmem, size = 0x10000, scoped, tag = 'input window, operand 5, single buffered']
    #allocation11 [shape = 'u8[16384]{0}', space=vmem, size = 0x4000, scoped, tag = 'output window, operand 0, single buffered']
    %12 = vsyncpa [#allocation3], 0
    %13 = vsyncpa [#allocation6], 0
    %14 = vsyncpa [#allocation9], 0
    %15 = vsyncpa [#allocation4], 0
    // Predicated region
    $region2: #{tpu_custom_call.1} parent=1 // pred_check
      _
    $region3: #{tpu_custom_call.1} parent=1 // pred_check_branch
      %17 = sbr.rel (0) target = $region5
    $region4: #{tpu_custom_call.1} parent=1 // pred_region
      %19 = vsyncadd [#allocation3], 0
      %s20 = sshll.u32 %s0, 4
      %s21 = int_to_ptr.hbm [resolvable:$true] %s20
      %s22 = sshll.u32 [#allocation2], 4
      %s23 = int_to_ptr.vmem [resolvable:$true] %s22
      %28 = dma.hbm_to_vmem [thread:$0]  %s21, 1792, %s23, [#allocation3], 448, 448, 28
    $region5: #{tpu_custom_call.1} parent=1 // pred_fallthru
      _
    // Predicated region
    $region6: #{tpu_custom_call.1} parent=1 // pred_check
      _
    $region7: #{tpu_custom_call.1} parent=1 // pred_check_branch
      %30 = sbr.rel (0) target = $region9
    $region8: #{tpu_custom_call.1} parent=1 // pred_region
      %32 = vsyncadd [#allocation6], 0
      %s33 = sshll.u32 %s1, 4
      %s34 = int_to_ptr.hbm [resolvable:$true] %s33
      %s35 = sshll.u32 [#allocation5], 4
      %s36 = int_to_ptr.vmem [resolvable:$true] %s35
      %41 = dma.hbm_to_vmem [thread:$0]  %s34, 14336, %s36, [#allocation6], 128, 128, 8
    $region9: #{tpu_custom_call.1} parent=1 // pred_fallthru
      _
    // Predicated region
    $region10: #{tpu_custom_call.1} parent=1 // pred_check
      _
    $region11: #{tpu_custom_call.1} parent=1 // pred_check_branch
      %43 = sbr.rel (0) target = $region13
    $region12: #{tpu_custom_call.1} parent=1 // pred_region
      %45 = vsyncadd [#allocation6], 0
      %s47 = sshll.u32 %s2, 4
      %s48 = int_to_ptr.hbm [resolvable:$true] %s47
      %s49 = sshll.u32 [#allocation7], 4
      %s50 = int_to_ptr.vmem [resolvable:$true] %s49
      %52 = dma.hbm_to_vmem [thread:$0]  %s48, 32, %s50, [#allocation6]
    $region13: #{tpu_custom_call.1} parent=1 // pred_fallthru
      _
    // Predicated region
    $region14: #{tpu_custom_call.1} parent=1 // pred_check
      _
    $region15: #{tpu_custom_call.1} parent=1 // pred_check_branch
      %54 = sbr.rel (0) target = $region17
    $region16: #{tpu_custom_call.1} parent=1 // pred_region
      %56 = vsyncadd [#allocation9], 0
      %s57 = sshll.u32 %s3, 4
      %s58 = int_to_ptr.hbm [resolvable:$true] %s57
      %s59 = sshll.u32 [#allocation8], 4
      %s60 = int_to_ptr.vmem [resolvable:$true] %s59
      %65 = dma.hbm_to_vmem [thread:$0]  %s58, 4096, %s60, [#allocation9], 128, 128, 8
    $region17: #{tpu_custom_call.1} parent=1 // pred_fallthru
      _
    // Predicated region
    $region18: #{tpu_custom_call.1} parent=1 // pred_check
      _
    $region19: #{tpu_custom_call.1} parent=1 // pred_check_branch
      %67 = sbr.rel (0) target = $region21
    $region20: #{tpu_custom_call.1} parent=1 // pred_region
      _
    $region21: #{tpu_custom_call.1} parent=1 // pred_fallthru
      _
    // Predicated region
    $region22: #{tpu_custom_call.1} parent=1 // pred_check
      _
    $region23: #{tpu_custom_call.1} parent=1 // pred_check_branch
      %69 = sbr.rel (0) target = $region25
    $region24: #{tpu_custom_call.1} parent=1 // pred_region
      %71 = vsyncadd [#allocation9], 0
      %s72 = sshll.u32 %s5, 4
      %s73 = int_to_ptr.hbm [resolvable:$true] %s72
      %s74 = sshll.u32 [#allocation10], 4
      %s75 = int_to_ptr.vmem [resolvable:$true] %s74
      %80 = dma.hbm_to_vmem [thread:$0]  %s73, 2048, %s75, [#allocation9], 64, 64, 4
    $region25: #{tpu_custom_call.1} parent=1 // pred_fallthru
      _
    // Predicated region
    $region26: #{tpu_custom_call.1} parent=1 // pred_check
      _
    $region27: #{tpu_custom_call.1} parent=1 // pred_check_branch
      %82 = sbr.rel (0) target = $region29
    $region28: #{tpu_custom_call.1} parent=1 // pred_region
      _
    $region29: #{tpu_custom_call.1} parent=1 // pred_fallthru
      _
    // Predicated region
    $region30: #{tpu_custom_call.1} parent=1 // pred_check
      _
    $region31: #{tpu_custom_call.1} parent=1 // pred_check_branch
      %84 = sbr.rel (0) target = $region33
    $region32: #{tpu_custom_call.1} parent=1 // pred_region
      %86 = dma.done [#allocation3], 1792
    $region33: #{tpu_custom_call.1} parent=1 // pred_fallthru
      _
    // Predicated region
    $region34: #{tpu_custom_call.1} parent=1 // pred_check
      _
    $region35: #{tpu_custom_call.1} parent=1 // pred_check_branch
      %88 = sbr.rel (0) target = $region37
    $region36: #{tpu_custom_call.1} parent=1 // pred_region
      %90 = dma.done [#allocation6], 14336
    $region37: #{tpu_custom_call.1} parent=1 // pred_fallthru
      _
    // Predicated region
    $region38: #{tpu_custom_call.1} parent=1 // pred_check
      _
    $region39: #{tpu_custom_call.1} parent=1 // pred_check_branch
      %92 = sbr.rel (0) target = $region41
    $region40: #{tpu_custom_call.1} parent=1 // pred_region
      %94 = dma.done [#allocation6], 32
    $region41: #{tpu_custom_call.1} parent=1 // pred_fallthru
      _
    // Predicated region
    $region42: #{tpu_custom_call.1} parent=1 // pred_check
      _
    $region43: #{tpu_custom_call.1} parent=1 // pred_check_branch
      %96 = sbr.rel (0) target = $region45
    $region44: #{tpu_custom_call.1} parent=1 // pred_region
      %98 = dma.done [#allocation9], 4096
    $region45: #{tpu_custom_call.1} parent=1 // pred_fallthru
      _
    // Predicated region
    $region46: #{tpu_custom_call.1} parent=1 // pred_check
      _
    $region47: #{tpu_custom_call.1} parent=1 // pred_check_branch
      %100 = sbr.rel (0) target = $region49
    $region48: #{tpu_custom_call.1} parent=1 // pred_region
      %102 = dma.done [#allocation9], 2048
    $region49: #{tpu_custom_call.1} parent=1 // pred_fallthru
      _
    %v103 = vld [vmem:[#allocation2] sm:$0xff]
    %v104 = vld [vmem:[#allocation2 + $0x8] sm:$0xff]
    %v105 = vld [vmem:[#allocation2 + $0x10] sm:$0xff]
    %v106 = vld [vmem:[#allocation2 + $0x18] sm:$0xf]
    %v107 = vld [vmem:[#allocation2 + $0x1c] sm:$0xff]
    %v108 = vld [vmem:[#allocation2 + $0x24] sm:$0xff]
    %v109 = vld [vmem:[#allocation2 + $0x2c] sm:$0xff]
    %v110 = vld [vmem:[#allocation2 + $0x34] sm:$0xf]
    %v111 = vld [vmem:[#allocation2 + $0x38] sm:$0xff]
    %v112 = vld [vmem:[#allocation2 + $0x40] sm:$0xff]
    %v113 = vld [vmem:[#allocation2 + $0x48] sm:$0xff]
    %v114 = vld [vmem:[#allocation2 + $0x50] sm:$0xf]
    %v115 = vld [vmem:[#allocation2 + $0x54] sm:$0xff]
    %v116 = vld [vmem:[#allocation2 + $0x5c] sm:$0xff]
    %v117 = vld [vmem:[#allocation2 + $0x64] sm:$0xff]
    %v118 = vld [vmem:[#allocation2 + $0x6c] sm:$0xf]
    %v119 = vld [vmem:[#allocation5] sm:$0xff]
    %v120 = vld [vmem:[#allocation5 + $0x8] sm:$0xff]
    %v121 = vld [vmem:[#allocation5 + $0x10] sm:$0xff]
    %v122 = vld [vmem:[#allocation5 + $0x18] sm:$0xff]
    %v123 = vld [vmem:[#allocation5 + $0x20] sm:$0xff]
    %v124 = vld [vmem:[#allocation5 + $0x28] sm:$0xff]
    %v125 = vld [vmem:[#allocation5 + $0x30] sm:$0xff]
    %v126 = vld [vmem:[#allocation5 + $0x38] sm:$0xff]
    %v127 = vld [vmem:[#allocation5 + $0x40] sm:$0xff]
    %v128 = vld [vmem:[#allocation5 + $0x48] sm:$0xff]
    %v129 = vld [vmem:[#allocation5 + $0x50] sm:$0xff]
    %v130 = vld [vmem:[#allocation5 + $0x58] sm:$0xff]
    %v131 = vld [vmem:[#allocation5 + $0x60] sm:$0xff]
    %v132 = vld [vmem:[#allocation5 + $0x68] sm:$0xff]
    %v133 = vld [vmem:[#allocation5 + $0x70] sm:$0xff]
    %v134 = vld [vmem:[#allocation5 + $0x78] sm:$0xff]
    %v135 = vld [vmem:[#allocation5 + $0x80] sm:$0xff]
    %v136 = vld [vmem:[#allocation5 + $0x88] sm:$0xff]
    %v137 = vld [vmem:[#allocation5 + $0x90] sm:$0xff]
    %v138 = vld [vmem:[#allocation5 + $0x98] sm:$0xff]
    %v139 = vld [vmem:[#allocation5 + $0xa0] sm:$0xff]
    %v140 = vld [vmem:[#allocation5 + $0xa8] sm:$0xff]
    %v141 = vld [vmem:[#allocation5 + $0xb0] sm:$0xff]
    %v142 = vld [vmem:[#allocation5 + $0xb8] sm:$0xff]
    %v143 = vld [vmem:[#allocation5 + $0xc0] sm:$0xff]
    %v144 = vld [vmem:[#allocation5 + $0xc8] sm:$0xff]
    %v145 = vld [vmem:[#allocation5 + $0xd0] sm:$0xff]
    %v146 = vld [vmem:[#allocation5 + $0xd8] sm:$0xff]
    %v147 = vld [vmem:[#allocation5 + $0xe0] sm:$0xff]
    %v148 = vld [vmem:[#allocation5 + $0xe8] sm:$0xff]
    %v149 = vld [vmem:[#allocation5 + $0xf0] sm:$0xff]
    %v150 = vld [vmem:[#allocation5 + $0xf8] sm:$0xff]
    %v151 = vld [vmem:[#allocation5 + $0x100] sm:$0xff]
    %v152 = vld [vmem:[#allocation5 + $0x108] sm:$0xff]
    %v153 = vld [vmem:[#allocation5 + $0x110] sm:$0xff]
    %v154 = vld [vmem:[#allocation5 + $0x118] sm:$0xff]
    %v155 = vld [vmem:[#allocation5 + $0x120] sm:$0xff]
    %v156 = vld [vmem:[#allocation5 + $0x128] sm:$0xff]
    %v157 = vld [vmem:[#allocation5 + $0x130] sm:$0xff]
    %v158 = vld [vmem:[#allocation5 + $0x138] sm:$0xff]
    %v159 = vld [vmem:[#allocation5 + $0x140] sm:$0xff]
    %v160 = vld [vmem:[#allocation5 + $0x148] sm:$0xff]
    %v161 = vld [vmem:[#allocation5 + $0x150] sm:$0xff]
    %v162 = vld [vmem:[#allocation5 + $0x158] sm:$0xff]
    %v163 = vld [vmem:[#allocation5 + $0x160] sm:$0xff]
    %v164 = vld [vmem:[#allocation5 + $0x168] sm:$0xff]
    %v165 = vld [vmem:[#allocation5 + $0x170] sm:$0xff]
    %v166 = vld [vmem:[#allocation5 + $0x178] sm:$0xff]
    %v167 = vld [vmem:[#allocation5 + $0x180] sm:$0xff]
    %v168 = vld [vmem:[#allocation5 + $0x188] sm:$0xff]
    %v169 = vld [vmem:[#allocation5 + $0x190] sm:$0xff]
    %v170 = vld [vmem:[#allocation5 + $0x198] sm:$0xff]
    %v171 = vld [vmem:[#allocation5 + $0x1a0] sm:$0xff]
    %v172 = vld [vmem:[#allocation5 + $0x1a8] sm:$0xff]
    %v173 = vld [vmem:[#allocation5 + $0x1b0] sm:$0xff]
    %v174 = vld [vmem:[#allocation5 + $0x1b8] sm:$0xff]
    %v175 = vld [vmem:[#allocation5 + $0x1c0] sm:$0xff]
    %v176 = vld [vmem:[#allocation5 + $0x1c8] sm:$0xff]
    %v177 = vld [vmem:[#allocation5 + $0x1d0] sm:$0xff]
    %v178 = vld [vmem:[#allocation5 + $0x1d8] sm:$0xff]
    %v179 = vld [vmem:[#allocation5 + $0x1e0] sm:$0xff]
    %v180 = vld [vmem:[#allocation5 + $0x1e8] sm:$0xff]
    %v181 = vld [vmem:[#allocation5 + $0x1f0] sm:$0xff]
    %v182 = vld [vmem:[#allocation5 + $0x1f8] sm:$0xff]
    %v183 = vld [vmem:[#allocation5 + $0x200] sm:$0xff]
    %v184 = vld [vmem:[#allocation5 + $0x208] sm:$0xff]
    %v185 = vld [vmem:[#allocation5 + $0x210] sm:$0xff]
    %v186 = vld [vmem:[#allocation5 + $0x218] sm:$0xff]
    %v187 = vld [vmem:[#allocation5 + $0x220] sm:$0xff]
    %v188 = vld [vmem:[#allocation5 + $0x228] sm:$0xff]
    %v189 = vld [vmem:[#allocation5 + $0x230] sm:$0xff]
    %v190 = vld [vmem:[#allocation5 + $0x238] sm:$0xff]
    %v191 = vld [vmem:[#allocation5 + $0x240] sm:$0xff]
    %v192 = vld [vmem:[#allocation5 + $0x248] sm:$0xff]
    %v193 = vld [vmem:[#allocation5 + $0x250] sm:$0xff]
    %v194 = vld [vmem:[#allocation5 + $0x258] sm:$0xff]
    %v195 = vld [vmem:[#allocation5 + $0x260] sm:$0xff]
    %v196 = vld [vmem:[#allocation5 + $0x268] sm:$0xff]
    %v197 = vld [vmem:[#allocation5 + $0x270] sm:$0xff]
    %v198 = vld [vmem:[#allocation5 + $0x278] sm:$0xff]
    %v199 = vld [vmem:[#allocation5 + $0x280] sm:$0xff]
    %v200 = vld [vmem:[#allocation5 + $0x288] sm:$0xff]
    %v201 = vld [vmem:[#allocation5 + $0x290] sm:$0xff]
    %v202 = vld [vmem:[#allocation5 + $0x298] sm:$0xff]
    %v203 = vld [vmem:[#allocation5 + $0x2a0] sm:$0xff]
    %v204 = vld [vmem:[#allocation5 + $0x2a8] sm:$0xff]
    %v205 = vld [vmem:[#allocation5 + $0x2b0] sm:$0xff]
    %v206 = vld [vmem:[#allocation5 + $0x2b8] sm:$0xff]
    %v207 = vld [vmem:[#allocation5 + $0x2c0] sm:$0xff]
    %v208 = vld [vmem:[#allocation5 + $0x2c8] sm:$0xff]
    %v209 = vld [vmem:[#allocation5 + $0x2d0] sm:$0xff]
    %v210 = vld [vmem:[#allocation5 + $0x2d8] sm:$0xff]
    %v211 = vld [vmem:[#allocation5 + $0x2e0] sm:$0xff]
    %v212 = vld [vmem:[#allocation5 + $0x2e8] sm:$0xff]
    %v213 = vld [vmem:[#allocation5 + $0x2f0] sm:$0xff]
    %v214 = vld [vmem:[#allocation5 + $0x2f8] sm:$0xff]
    %v215 = vld [vmem:[#allocation5 + $0x300] sm:$0xff]
    %v216 = vld [vmem:[#allocation5 + $0x308] sm:$0xff]
    %v217 = vld [vmem:[#allocation5 + $0x310] sm:$0xff]
    %v218 = vld [vmem:[#allocation5 + $0x318] sm:$0xff]
    %v219 = vld [vmem:[#allocation5 + $0x320] sm:$0xff]
    %v220 = vld [vmem:[#allocation5 + $0x328] sm:$0xff]
    %v221 = vld [vmem:[#allocation5 + $0x330] sm:$0xff]
    %v222 = vld [vmem:[#allocation5 + $0x338] sm:$0xff]
    %v223 = vld [vmem:[#allocation5 + $0x340] sm:$0xff]
    %v224 = vld [vmem:[#allocation5 + $0x348] sm:$0xff]
    %v225 = vld [vmem:[#allocation5 + $0x350] sm:$0xff]
    %v226 = vld [vmem:[#allocation5 + $0x358] sm:$0xff]
    %v227 = vld [vmem:[#allocation5 + $0x360] sm:$0xff]
    %v228 = vld [vmem:[#allocation5 + $0x368] sm:$0xff]
    %v229 = vld [vmem:[#allocation5 + $0x370] sm:$0xff]
    %v230 = vld [vmem:[#allocation5 + $0x378] sm:$0xff]
    %v231 = vld [vmem:[#allocation7] sm:$0x3]
    %v233 = vperm.slane %v231, 0
    %v234 = vperm.slane %v231, 1
    %v253 = vunpack.c.l.b16 %v103
    %v254 = vunpack.c.h.b16 %v103
    %v255 = vunpack.c.l.b16 %v104
    %v256 = vunpack.c.h.b16 %v104
    %v257 = vunpack.c.l.b16 %v105
    %v258 = vunpack.c.h.b16 %v105
    %v259 = vunpack.c.l.b16 %v106
    %v260 = vunpack.c.l.b16 %v107
    %v261 = vunpack.c.h.b16 %v107
    %v262 = vunpack.c.l.b16 %v108
    %v263 = vunpack.c.h.b16 %v108
    %v264 = vunpack.c.l.b16 %v109
    %v265 = vunpack.c.h.b16 %v109
    %v266 = vunpack.c.l.b16 %v110
    %v267 = vunpack.c.l.b16 %v111
    %v268 = vunpack.c.h.b16 %v111
    %v269 = vunpack.c.l.b16 %v112
    %v270 = vunpack.c.h.b16 %v112
    %v271 = vunpack.c.l.b16 %v113
    %v272 = vunpack.c.h.b16 %v113
    %v273 = vunpack.c.l.b16 %v114
    %v274 = vunpack.c.l.b16 %v115
    %v275 = vunpack.c.h.b16 %v115
    %v276 = vunpack.c.l.b16 %v116
    %v277 = vunpack.c.h.b16 %v116
    %v278 = vunpack.c.l.b16 %v117
    %v279 = vunpack.c.h.b16 %v117
    %v280 = vunpack.c.l.b16 %v118
    %v281 = vpack.c.b16 %v260, %v253
    %v282 = vpack.c.b16 %v261, %v254
    %v283 = vpack.c.b16 %v262, %v255
    %v284 = vpack.c.b16 %v263, %v256
    %v285 = vpack.c.b16 %v264, %v257
    %v286 = vpack.c.b16 %v265, %v258
    %v287 = vpack.c.b16 %v266, %v259
    %v288 = vpack.c.b16 %v274, %v267
    %v289 = vpack.c.b16 %v275, %v268
    %v290 = vpack.c.b16 %v276, %v269
    %v291 = vpack.c.b16 %v277, %v270
    %v292 = vpack.c.b16 %v278, %v271
    %v293 = vpack.c.b16 %v279, %v272
    %v294 = vpack.c.b16 %v280, %v273
    %v421 = vunpack.c.l.b16 %v119
    %v422 = vunpack.c.h.b16 %v119
    %v423 = vunpack.c.l.b16 %v120
    %v424 = vunpack.c.h.b16 %v120
    %v425 = vunpack.c.l.b16 %v121
    %v426 = vunpack.c.h.b16 %v121
    %v427 = vunpack.c.l.b16 %v122
    %v428 = vunpack.c.h.b16 %v122
    %v429 = vunpack.c.l.b16 %v123
    %v430 = vunpack.c.h.b16 %v123
    %v431 = vunpack.c.l.b16 %v124
    %v432 = vunpack.c.h.b16 %v124
    %v433 = vunpack.c.l.b16 %v125
    %v434 = vunpack.c.h.b16 %v125
    %v435 = vunpack.c.l.b16 %v126
    %v436 = vunpack.c.h.b16 %v126
    %v437 = vunpack.c.l.b16 %v127
    %v438 = vunpack.c.h.b16 %v127
    %v439 = vunpack.c.l.b16 %v128
    %v440 = vunpack.c.h.b16 %v128
    %v441 = vunpack.c.l.b16 %v129
    %v442 = vunpack.c.h.b16 %v129
    %v443 = vunpack.c.l.b16 %v130
    %v444 = vunpack.c.h.b16 %v130
    %v445 = vunpack.c.l.b16 %v131
    %v446 = vunpack.c.h.b16 %v131
    %v447 = vunpack.c.l.b16 %v132
    %v448 = vunpack.c.h.b16 %v132
    %v449 = vunpack.c.l.b16 %v133
    %v450 = vunpack.c.h.b16 %v133
    %v451 = vunpack.c.l.b16 %v134
    %v452 = vunpack.c.h.b16 %v134
    %v453 = vunpack.c.l.b16 %v135
    %v454 = vunpack.c.h.b16 %v135
    %v455 = vunpack.c.l.b16 %v136
    %v456 = vunpack.c.h.b16 %v136
    %v457 = vunpack.c.l.b16 %v137
    %v458 = vunpack.c.h.b16 %v137
    %v459 = vunpack.c.l.b16 %v138
    %v460 = vunpack.c.h.b16 %v138
    %v461 = vunpack.c.l.b16 %v139
    %v462 = vunpack.c.h.b16 %v139
    %v463 = vunpack.c.l.b16 %v140
    %v464 = vunpack.c.h.b16 %v140
    %v465 = vunpack.c.l.b16 %v141
    %v466 = vunpack.c.h.b16 %v141
    %v467 = vunpack.c.l.b16 %v142
    %v468 = vunpack.c.h.b16 %v142
    %v469 = vunpack.c.l.b16 %v143
    %v470 = vunpack.c.h.b16 %v143
    %v471 = vunpack.c.l.b16 %v144
    %v472 = vunpack.c.h.b16 %v144
    %v473 = vunpack.c.l.b16 %v145
    %v474 = vunpack.c.h.b16 %v145
    %v475 = vunpack.c.l.b16 %v146
    %v476 = vunpack.c.h.b16 %v146
    %v477 = vunpack.c.l.b16 %v147
    %v478 = vunpack.c.h.b16 %v147
    %v479 = vunpack.c.l.b16 %v148
    %v480 = vunpack.c.h.b16 %v148
    %v481 = vunpack.c.l.b16 %v149
    %v482 = vunpack.c.h.b16 %v149
    %v483 = vunpack.c.l.b16 %v150
    %v484 = vunpack.c.h.b16 %v150
    %v485 = vunpack.c.l.b16 %v151
    %v486 = vunpack.c.h.b16 %v151
    %v487 = vunpack.c.l.b16 %v152
    %v488 = vunpack.c.h.b16 %v152
    %v489 = vunpack.c.l.b16 %v153
    %v490 = vunpack.c.h.b16 %v153
    %v491 = vunpack.c.l.b16 %v154
    %v492 = vunpack.c.h.b16 %v154
    %v493 = vunpack.c.l.b16 %v155
    %v494 = vunpack.c.h.b16 %v155
    %v495 = vunpack.c.l.b16 %v156
    %v496 = vunpack.c.h.b16 %v156
    %v497 = vunpack.c.l.b16 %v157
    %v498 = vunpack.c.h.b16 %v157
    %v499 = vunpack.c.l.b16 %v158
    %v500 = vunpack.c.h.b16 %v158
    %v501 = vunpack.c.l.b16 %v159
    %v502 = vunpack.c.h.b16 %v159
    %v503 = vunpack.c.l.b16 %v160
    %v504 = vunpack.c.h.b16 %v160
    %v505 = vunpack.c.l.b16 %v161
    %v506 = vunpack.c.h.b16 %v161
    %v507 = vunpack.c.l.b16 %v162
    %v508 = vunpack.c.h.b16 %v162
    %v509 = vunpack.c.l.b16 %v163
    %v510 = vunpack.c.h.b16 %v163
    %v511 = vunpack.c.l.b16 %v164
    %v512 = vunpack.c.h.b16 %v164
    %v513 = vunpack.c.l.b16 %v165
    %v514 = vunpack.c.h.b16 %v165
    %v515 = vunpack.c.l.b16 %v166
    %v516 = vunpack.c.h.b16 %v166
    %v517 = vunpack.c.l.b16 %v167
    %v518 = vunpack.c.h.b16 %v167
    %v519 = vunpack.c.l.b16 %v168
    %v520 = vunpack.c.h.b16 %v168
    %v521 = vunpack.c.l.b16 %v169
    %v522 = vunpack.c.h.b16 %v169
    %v523 = vunpack.c.l.b16 %v170
    %v524 = vunpack.c.h.b16 %v170
    %v525 = vunpack.c.l.b16 %v171
    %v526 = vunpack.c.h.b16 %v171
    %v527 = vunpack.c.l.b16 %v172
    %v528 = vunpack.c.h.b16 %v172
    %v529 = vunpack.c.l.b16 %v173
    %v530 = vunpack.c.h.b16 %v173
    %v531 = vunpack.c.l.b16 %v174
    %v532 = vunpack.c.h.b16 %v174
    %v533 = vunpack.c.l.b16 %v175
    %v534 = vunpack.c.h.b16 %v175
    %v535 = vunpack.c.l.b16 %v176
    %v536 = vunpack.c.h.b16 %v176
    %v537 = vunpack.c.l.b16 %v177
    %v538 = vunpack.c.h.b16 %v177
    %v539 = vunpack.c.l.b16 %v178
    %v540 = vunpack.c.h.b16 %v178
    %v541 = vunpack.c.l.b16 %v179
    %v542 = vunpack.c.h.b16 %v179
    %v543 = vunpack.c.l.b16 %v180
    %v544 = vunpack.c.h.b16 %v180
    %v545 = vunpack.c.l.b16 %v181
    %v546 = vunpack.c.h.b16 %v181
    %v547 = vunpack.c.l.b16 %v182
    %v548 = vunpack.c.h.b16 %v182
    %v549 = vunpack.c.l.b16 %v183
    %v550 = vunpack.c.h.b16 %v183
    %v551 = vunpack.c.l.b16 %v184
    %v552 = vunpack.c.h.b16 %v184
    %v553 = vunpack.c.l.b16 %v185
    %v554 = vunpack.c.h.b16 %v185
    %v555 = vunpack.c.l.b16 %v186
    %v556 = vunpack.c.h.b16 %v186
    %v557 = vunpack.c.l.b16 %v187
    %v558 = vunpack.c.h.b16 %v187
    %v559 = vunpack.c.l.b16 %v188
    %v560 = vunpack.c.h.b16 %v188
    %v561 = vunpack.c.l.b16 %v189
    %v562 = vunpack.c.h.b16 %v189
    %v563 = vunpack.c.l.b16 %v190
    %v564 = vunpack.c.h.b16 %v190
    %v565 = vunpack.c.l.b16 %v191
    %v566 = vunpack.c.h.b16 %v191
    %v567 = vunpack.c.l.b16 %v192
    %v568 = vunpack.c.h.b16 %v192
    %v569 = vunpack.c.l.b16 %v193
    %v570 = vunpack.c.h.b16 %v193
    %v571 = vunpack.c.l.b16 %v194
    %v572 = vunpack.c.h.b16 %v194
    %v573 = vunpack.c.l.b16 %v195
    %v574 = vunpack.c.h.b16 %v195
    %v575 = vunpack.c.l.b16 %v196
    %v576 = vunpack.c.h.b16 %v196
    %v577 = vunpack.c.l.b16 %v197
    %v578 = vunpack.c.h.b16 %v197
    %v579 = vunpack.c.l.b16 %v198
    %v580 = vunpack.c.h.b16 %v198
    %v581 = vunpack.c.l.b16 %v199
    %v582 = vunpack.c.h.b16 %v199
    %v583 = vunpack.c.l.b16 %v200
    %v584 = vunpack.c.h.b16 %v200
    %v585 = vunpack.c.l.b16 %v201
    %v586 = vunpack.c.h.b16 %v201
    %v587 = vunpack.c.l.b16 %v202
    %v588 = vunpack.c.h.b16 %v202
    %v589 = vunpack.c.l.b16 %v203
    %v590 = vunpack.c.h.b16 %v203
    %v591 = vunpack.c.l.b16 %v204
    %v592 = vunpack.c.h.b16 %v204
    %v593 = vunpack.c.l.b16 %v205
    %v594 = vunpack.c.h.b16 %v205
    %v595 = vunpack.c.l.b16 %v206
    %v596 = vunpack.c.h.b16 %v206
    %v597 = vunpack.c.l.b16 %v207
    %v598 = vunpack.c.h.b16 %v207
    %v599 = vunpack.c.l.b16 %v208
    %v600 = vunpack.c.h.b16 %v208
    %v601 = vunpack.c.l.b16 %v209
    %v602 = vunpack.c.h.b16 %v209
    %v603 = vunpack.c.l.b16 %v210
    %v604 = vunpack.c.h.b16 %v210
    %v605 = vunpack.c.l.b16 %v211
    %v606 = vunpack.c.h.b16 %v211
    %v607 = vunpack.c.l.b16 %v212
    %v608 = vunpack.c.h.b16 %v212
    %v609 = vunpack.c.l.b16 %v213
    %v610 = vunpack.c.h.b16 %v213
    %v611 = vunpack.c.l.b16 %v214
    %v612 = vunpack.c.h.b16 %v214
    %v613 = vunpack.c.l.b16 %v215
    %v614 = vunpack.c.h.b16 %v215
    %v615 = vunpack.c.l.b16 %v216
    %v616 = vunpack.c.h.b16 %v216
    %v617 = vunpack.c.l.b16 %v217
    %v618 = vunpack.c.h.b16 %v217
    %v619 = vunpack.c.l.b16 %v218
    %v620 = vunpack.c.h.b16 %v218
    %v621 = vunpack.c.l.b16 %v219
    %v622 = vunpack.c.h.b16 %v219
    %v623 = vunpack.c.l.b16 %v220
    %v624 = vunpack.c.h.b16 %v220
    %v625 = vunpack.c.l.b16 %v221
    %v626 = vunpack.c.h.b16 %v221
    %v627 = vunpack.c.l.b16 %v222
    %v628 = vunpack.c.h.b16 %v222
    %v629 = vunpack.c.l.b16 %v223
    %v630 = vunpack.c.h.b16 %v223
    %v631 = vunpack.c.l.b16 %v224
    %v632 = vunpack.c.h.b16 %v224
    %v633 = vunpack.c.l.b16 %v225
    %v634 = vunpack.c.h.b16 %v225
    %v635 = vunpack.c.l.b16 %v226
    %v636 = vunpack.c.h.b16 %v226
    %v637 = vunpack.c.l.b16 %v227
    %v638 = vunpack.c.h.b16 %v227
    %v639 = vunpack.c.l.b16 %v228
    %v640 = vunpack.c.h.b16 %v228
    %v641 = vunpack.c.l.b16 %v229
    %v642 = vunpack.c.h.b16 %v229
    %v643 = vunpack.c.l.b16 %v230
    %v644 = vunpack.c.h.b16 %v230
    %v645 = vpack.c.b16 %v423, %v421
    %v646 = vpack.c.b16 %v424, %v422
    %v647 = vpack.c.b16 %v427, %v425
    %v648 = vpack.c.b16 %v428, %v426
    %v649 = vpack.c.b16 %v431, %v429
    %v650 = vpack.c.b16 %v432, %v430
    %v651 = vpack.c.b16 %v435, %v433
    %v652 = vpack.c.b16 %v436, %v434
    %v653 = vpack.c.b16 %v439, %v437
    %v654 = vpack.c.b16 %v440, %v438
    %v655 = vpack.c.b16 %v443, %v441
    %v656 = vpack.c.b16 %v444, %v442
    %v657 = vpack.c.b16 %v447, %v445
    %v658 = vpack.c.b16 %v448, %v446
    %v659 = vpack.c.b16 %v451, %v449
    %v660 = vpack.c.b16 %v452, %v450
    %v661 = vpack.c.b16 %v455, %v453
    %v662 = vpack.c.b16 %v456, %v454
    %v663 = vpack.c.b16 %v459, %v457
    %v664 = vpack.c.b16 %v460, %v458
    %v665 = vpack.c.b16 %v463, %v461
    %v666 = vpack.c.b16 %v464, %v462
    %v667 = vpack.c.b16 %v467, %v465
    %v668 = vpack.c.b16 %v468, %v466
    %v669 = vpack.c.b16 %v471, %v469
    %v670 = vpack.c.b16 %v472, %v470
    %v671 = vpack.c.b16 %v475, %v473
    %v672 = vpack.c.b16 %v476, %v474
    %v673 = vpack.c.b16 %v479, %v477
    %v674 = vpack.c.b16 %v480, %v478
    %v675 = vpack.c.b16 %v483, %v481
    %v676 = vpack.c.b16 %v484, %v482
    %v677 = vpack.c.b16 %v487, %v485
    %v678 = vpack.c.b16 %v488, %v486
    %v679 = vpack.c.b16 %v491, %v489
    %v680 = vpack.c.b16 %v492, %v490
    %v681 = vpack.c.b16 %v495, %v493
    %v682 = vpack.c.b16 %v496, %v494
    %v683 = vpack.c.b16 %v499, %v497
    %v684 = vpack.c.b16 %v500, %v498
    %v685 = vpack.c.b16 %v503, %v501
    %v686 = vpack.c.b16 %v504, %v502
    %v687 = vpack.c.b16 %v507, %v505
    %v688 = vpack.c.b16 %v508, %v506
    %v689 = vpack.c.b16 %v511, %v509
    %v690 = vpack.c.b16 %v512, %v510
    %v691 = vpack.c.b16 %v515, %v513
    %v692 = vpack.c.b16 %v516, %v514
    %v693 = vpack.c.b16 %v519, %v517
    %v694 = vpack.c.b16 %v520, %v518
    %v695 = vpack.c.b16 %v523, %v521
    %v696 = vpack.c.b16 %v524, %v522
    %v697 = vpack.c.b16 %v527, %v525
    %v698 = vpack.c.b16 %v528, %v526
    %v699 = vpack.c.b16 %v531, %v529
    %v700 = vpack.c.b16 %v532, %v530
    %v701 = vpack.c.b16 %v535, %v533
    %v702 = vpack.c.b16 %v536, %v534
    %v703 = vpack.c.b16 %v539, %v537
    %v704 = vpack.c.b16 %v540, %v538
    %v705 = vpack.c.b16 %v543, %v541
    %v706 = vpack.c.b16 %v544, %v542
    %v707 = vpack.c.b16 %v547, %v545
    %v708 = vpack.c.b16 %v548, %v546
    %v709 = vpack.c.b16 %v551, %v549
    %v710 = vpack.c.b16 %v552, %v550
    %v711 = vpack.c.b16 %v555, %v553
    %v712 = vpack.c.b16 %v556, %v554
    %v713 = vpack.c.b16 %v559, %v557
    %v714 = vpack.c.b16 %v560, %v558
    %v715 = vpack.c.b16 %v563, %v561
    %v716 = vpack.c.b16 %v564, %v562
    %v717 = vpack.c.b16 %v567, %v565
    %v718 = vpack.c.b16 %v568, %v566
    %v719 = vpack.c.b16 %v571, %v569
    %v720 = vpack.c.b16 %v572, %v570
    %v721 = vpack.c.b16 %v575, %v573
    %v722 = vpack.c.b16 %v576, %v574
    %v723 = vpack.c.b16 %v579, %v577
    %v724 = vpack.c.b16 %v580, %v578
    %v725 = vpack.c.b16 %v583, %v581
    %v726 = vpack.c.b16 %v584, %v582
    %v727 = vpack.c.b16 %v587, %v585
    %v728 = vpack.c.b16 %v588, %v586
    %v729 = vpack.c.b16 %v591, %v589
    %v730 = vpack.c.b16 %v592, %v590
    %v731 = vpack.c.b16 %v595, %v593
    %v732 = vpack.c.b16 %v596, %v594
    %v733 = vpack.c.b16 %v599, %v597
    %v734 = vpack.c.b16 %v600, %v598
    %v735 = vpack.c.b16 %v603, %v601
    %v736 = vpack.c.b16 %v604, %v602
    %v737 = vpack.c.b16 %v607, %v605
    %v738 = vpack.c.b16 %v608, %v606
    %v739 = vpack.c.b16 %v611, %v609
    %v740 = vpack.c.b16 %v612, %v610
    %v741 = vpack.c.b16 %v615, %v613
    %v742 = vpack.c.b16 %v616, %v614
    %v743 = vpack.c.b16 %v619, %v617
    %v744 = vpack.c.b16 %v620, %v618
    %v745 = vpack.c.b16 %v623, %v621
    %v746 = vpack.c.b16 %v624, %v622
    %v747 = vpack.c.b16 %v627, %v625
    %v748 = vpack.c.b16 %v628, %v626
    %v749 = vpack.c.b16 %v631, %v629
    %v750 = vpack.c.b16 %v632, %v630
    %v751 = vpack.c.b16 %v635, %v633
    %v752 = vpack.c.b16 %v636, %v634
    %v753 = vpack.c.b16 %v639, %v637
    %v754 = vpack.c.b16 %v640, %v638
    %v755 = vpack.c.b16 %v643, %v641
    %v756 = vpack.c.b16 %v644, %v642
    %869 = vmatpush.bf16.msra.mxu0 %v659
    %870 = vmatpush.bf16.msra.mxu0 %v657
    %871 = vmatpush.bf16.msra.mxu0 %v655
    %872 = vmatpush.bf16.msra.mxu0 %v653
    %873 = vmatpush.bf16.msra.mxu0 %v651
    %874 = vmatpush.bf16.msra.mxu0 %v649
    %875 = vmatpush.bf16.msra.mxu0 %v647
    %876 = vmatpush.bf16.msra.mxu0 %v645
    %877 = vmatmul.bf16.gmra.mxu0 %v281
    %v878 = vpop.f32.mrf.mxu0
    %v879 = vadd.f32 %v233, %v878
    %v880 = vpop.f32.mrf.mxu0
    %v881 = vadd.f32 %v233, %v880
    %882 = vmatmul.bf16.gmra.mxu0 %v288
    %v883 = vpop.f32.mrf.mxu0
    %v884 = vadd.f32 %v233, %v883
    %v885 = vpop.f32.mrf.mxu0
    %v886 = vadd.f32 %v233, %v885
    %887 = vdwg.mxu0
    %888 = vmatpush.bf16.msra.mxu0 %v675
    %889 = vmatpush.bf16.msra.mxu0 %v673
    %890 = vmatpush.bf16.msra.mxu0 %v671
    %891 = vmatpush.bf16.msra.mxu0 %v669
    %892 = vmatpush.bf16.msra.mxu0 %v667
    %893 = vmatpush.bf16.msra.mxu0 %v665
    %894 = vmatpush.bf16.msra.mxu0 %v663
    %895 = vmatpush.bf16.msra.mxu0 %v661
    %896 = vmatmul.bf16.gmra.mxu0 %v282
    %v897 = vpop.f32.mrf.mxu0
    %v898 = vadd.f32 %v879, %v897
    %v899 = vpop.f32.mrf.mxu0
    %v900 = vadd.f32 %v881, %v899
    %901 = vmatmul.bf16.gmra.mxu0 %v289
    %v902 = vpop.f32.mrf.mxu0
    %v903 = vadd.f32 %v884, %v902
    %v904 = vpop.f32.mrf.mxu0
    %v905 = vadd.f32 %v886, %v904
    %906 = vdwg.mxu0
    %907 = vmatpush.bf16.msra.mxu0 %v691
    %908 = vmatpush.bf16.msra.mxu0 %v689
    %909 = vmatpush.bf16.msra.mxu0 %v687
    %910 = vmatpush.bf16.msra.mxu0 %v685
    %911 = vmatpush.bf16.msra.mxu0 %v683
    %912 = vmatpush.bf16.msra.mxu0 %v681
    %913 = vmatpush.bf16.msra.mxu0 %v679
    %914 = vmatpush.bf16.msra.mxu0 %v677
    %915 = vmatmul.bf16.gmra.mxu0 %v283
    %v916 = vpop.f32.mrf.mxu0
    %v917 = vadd.f32 %v898, %v916
    %v918 = vpop.f32.mrf.mxu0
    %v919 = vadd.f32 %v900, %v918
    %920 = vmatmul.bf16.gmra.mxu0 %v290
    %v921 = vpop.f32.mrf.mxu0
    %v922 = vadd.f32 %v903, %v921
    %v923 = vpop.f32.mrf.mxu0
    %v924 = vadd.f32 %v905, %v923
    %925 = vdwg.mxu0
    %926 = vmatpush.bf16.msra.mxu0 %v707
    %927 = vmatpush.bf16.msra.mxu0 %v705
    %928 = vmatpush.bf16.msra.mxu0 %v703
    %929 = vmatpush.bf16.msra.mxu0 %v701
    %930 = vmatpush.bf16.msra.mxu0 %v699
    %931 = vmatpush.bf16.msra.mxu0 %v697
    %932 = vmatpush.bf16.msra.mxu0 %v695
    %933 = vmatpush.bf16.msra.mxu0 %v693
    %934 = vmatmul.bf16.gmra.mxu0 %v284
    %v935 = vpop.f32.mrf.mxu0
    %v936 = vadd.f32 %v917, %v935
    %v937 = vpop.f32.mrf.mxu0
    %v938 = vadd.f32 %v919, %v937
    %939 = vmatmul.bf16.gmra.mxu0 %v291
    %v940 = vpop.f32.mrf.mxu0
    %v941 = vadd.f32 %v922, %v940
    %v942 = vpop.f32.mrf.mxu0
    %v943 = vadd.f32 %v924, %v942
    %944 = vdwg.mxu0
    %945 = vmatpush.bf16.msra.mxu0 %v723
    %946 = vmatpush.bf16.msra.mxu0 %v721
    %947 = vmatpush.bf16.msra.mxu0 %v719
    %948 = vmatpush.bf16.msra.mxu0 %v717
    %949 = vmatpush.bf16.msra.mxu0 %v715
    %950 = vmatpush.bf16.msra.mxu0 %v713
    %951 = vmatpush.bf16.msra.mxu0 %v711
    %952 = vmatpush.bf16.msra.mxu0 %v709
    %953 = vmatmul.bf16.gmra.mxu0 %v285
    %v954 = vpop.f32.mrf.mxu0
    %v955 = vadd.f32 %v936, %v954
    %v956 = vpop.f32.mrf.mxu0
    %v957 = vadd.f32 %v938, %v956
    %958 = vmatmul.bf16.gmra.mxu0 %v292
    %v959 = vpop.f32.mrf.mxu0
    %v960 = vadd.f32 %v941, %v959
    %v961 = vpop.f32.mrf.mxu0
    %v962 = vadd.f32 %v943, %v961
    %963 = vdwg.mxu0
    %964 = vmatpush.bf16.msra.mxu0 %v739
    %965 = vmatpush.bf16.msra.mxu0 %v737
    %966 = vmatpush.bf16.msra.mxu0 %v735
    %967 = vmatpush.bf16.msra.mxu0 %v733
    %968 = vmatpush.bf16.msra.mxu0 %v731
    %969 = vmatpush.bf16.msra.mxu0 %v729
    %970 = vmatpush.bf16.msra.mxu0 %v727
    %971 = vmatpush.bf16.msra.mxu0 %v725
    %972 = vmatmul.bf16.gmra.mxu0 %v286
    %v973 = vpop.f32.mrf.mxu0
    %v974 = vadd.f32 %v955, %v973
    %v975 = vpop.f32.mrf.mxu0
    %v976 = vadd.f32 %v957, %v975
    %977 = vmatmul.bf16.gmra.mxu0 %v293
    %v978 = vpop.f32.mrf.mxu0
    %v979 = vadd.f32 %v960, %v978
    %v980 = vpop.f32.mrf.mxu0
    %v981 = vadd.f32 %v962, %v980
    %982 = vdwg.mxu0
    %983 = vmatpush.bf16.msra.mxu0 %v755
    %984 = vmatpush.bf16.msra.mxu0 %v753
    %985 = vmatpush.bf16.msra.mxu0 %v751
    %986 = vmatpush.bf16.msra.mxu0 %v749
    %987 = vmatpush.bf16.msra.mxu0 %v747
    %988 = vmatpush.bf16.msra.mxu0 %v745
    %989 = vmatpush.bf16.msra.mxu0 %v743
    %990 = vmatpush.bf16.msra.mxu0 %v741
    %991 = vmatmul.bf16.gmra.mxu0 %v287
    %v992 = vpop.f32.mrf.mxu0
    %v993 = vadd.f32 %v974, %v992
    %v994 = vpop.f32.mrf.mxu0
    %v995 = vadd.f32 %v976, %v994
    %996 = vmatmul.bf16.gmra.mxu0 %v294
    %v997 = vpop.f32.mrf.mxu0
    %v998 = vadd.f32 %v979, %v997
    %v999 = vpop.f32.mrf.mxu0
    %v1000 = vadd.f32 %v981, %v999
    %1001 = vdwg.mxu0
    %1002 = vmatpush.bf16.msra.mxu0 %v660
    %1003 = vmatpush.bf16.msra.mxu0 %v658
    %1004 = vmatpush.bf16.msra.mxu0 %v656
    %1005 = vmatpush.bf16.msra.mxu0 %v654
    %1006 = vmatpush.bf16.msra.mxu0 %v652
    %1007 = vmatpush.bf16.msra.mxu0 %v650
    %1008 = vmatpush.bf16.msra.mxu0 %v648
    %1009 = vmatpush.bf16.msra.mxu0 %v646
    %1010 = vmatmul.bf16.gmra.mxu0 %v281
    %v1011 = vpop.f32.mrf.mxu0
    %v1012 = vadd.f32 %v234, %v1011
    %v1013 = vpop.f32.mrf.mxu0
    %v1014 = vadd.f32 %v234, %v1013
    %1015 = vmatmul.bf16.gmra.mxu0 %v288
    %v1016 = vpop.f32.mrf.mxu0
    %v1017 = vadd.f32 %v234, %v1016
    %v1018 = vpop.f32.mrf.mxu0
    %v1019 = vadd.f32 %v234, %v1018
    %1020 = vdwg.mxu0
    %1021 = vmatpush.bf16.msra.mxu0 %v676
    %1022 = vmatpush.bf16.msra.mxu0 %v674
    %1023 = vmatpush.bf16.msra.mxu0 %v672
    %1024 = vmatpush.bf16.msra.mxu0 %v670
    %1025 = vmatpush.bf16.msra.mxu0 %v668
    %1026 = vmatpush.bf16.msra.mxu0 %v666
    %1027 = vmatpush.bf16.msra.mxu0 %v664
    %1028 = vmatpush.bf16.msra.mxu0 %v662
    %1029 = vmatmul.bf16.gmra.mxu0 %v282
    %v1030 = vpop.f32.mrf.mxu0
    %v1031 = vadd.f32 %v1012, %v1030
    %v1032 = vpop.f32.mrf.mxu0
    %v1033 = vadd.f32 %v1014, %v1032
    %1034 = vmatmul.bf16.gmra.mxu0 %v289
    %v1035 = vpop.f32.mrf.mxu0
    %v1036 = vadd.f32 %v1017, %v1035
    %v1037 = vpop.f32.mrf.mxu0
    %v1038 = vadd.f32 %v1019, %v1037
    %1039 = vdwg.mxu0
    %1040 = vmatpush.bf16.msra.mxu0 %v692
    %1041 = vmatpush.bf16.msra.mxu0 %v690
    %1042 = vmatpush.bf16.msra.mxu0 %v688
    %1043 = vmatpush.bf16.msra.mxu0 %v686
    %1044 = vmatpush.bf16.msra.mxu0 %v684
    %1045 = vmatpush.bf16.msra.mxu0 %v682
    %1046 = vmatpush.bf16.msra.mxu0 %v680
    %1047 = vmatpush.bf16.msra.mxu0 %v678
    %1048 = vmatmul.bf16.gmra.mxu0 %v283
    %v1049 = vpop.f32.mrf.mxu0
    %v1050 = vadd.f32 %v1031, %v1049
    %v1051 = vpop.f32.mrf.mxu0
    %v1052 = vadd.f32 %v1033, %v1051
    %1053 = vmatmul.bf16.gmra.mxu0 %v290
    %v1054 = vpop.f32.mrf.mxu0
    %v1055 = vadd.f32 %v1036, %v1054
    %v1056 = vpop.f32.mrf.mxu0
    %v1057 = vadd.f32 %v1038, %v1056
    %1058 = vdwg.mxu0
    %1059 = vmatpush.bf16.msra.mxu0 %v708
    %1060 = vmatpush.bf16.msra.mxu0 %v706
    %1061 = vmatpush.bf16.msra.mxu0 %v704
    %1062 = vmatpush.bf16.msra.mxu0 %v702
    %1063 = vmatpush.bf16.msra.mxu0 %v700
    %1064 = vmatpush.bf16.msra.mxu0 %v698
    %1065 = vmatpush.bf16.msra.mxu0 %v696
    %1066 = vmatpush.bf16.msra.mxu0 %v694
    %1067 = vmatmul.bf16.gmra.mxu0 %v284
    %v1068 = vpop.f32.mrf.mxu0
    %v1069 = vadd.f32 %v1050, %v1068
    %v1070 = vpop.f32.mrf.mxu0
    %v1071 = vadd.f32 %v1052, %v1070
    %1072 = vmatmul.bf16.gmra.mxu0 %v291
    %v1073 = vpop.f32.mrf.mxu0
    %v1074 = vadd.f32 %v1055, %v1073
    %v1075 = vpop.f32.mrf.mxu0
    %v1076 = vadd.f32 %v1057, %v1075
    %1077 = vdwg.mxu0
    %1078 = vmatpush.bf16.msra.mxu0 %v724
    %1079 = vmatpush.bf16.msra.mxu0 %v722
    %1080 = vmatpush.bf16.msra.mxu0 %v720
    %1081 = vmatpush.bf16.msra.mxu0 %v718
    %1082 = vmatpush.bf16.msra.mxu0 %v716
    %1083 = vmatpush.bf16.msra.mxu0 %v714
    %1084 = vmatpush.bf16.msra.mxu0 %v712
    %1085 = vmatpush.bf16.msra.mxu0 %v710
    %1086 = vmatmul.bf16.gmra.mxu0 %v285
    %v1087 = vpop.f32.mrf.mxu0
    %v1088 = vadd.f32 %v1069, %v1087
    %v1089 = vpop.f32.mrf.mxu0
    %v1090 = vadd.f32 %v1071, %v1089
    %1091 = vmatmul.bf16.gmra.mxu0 %v292
    %v1092 = vpop.f32.mrf.mxu0
    %v1093 = vadd.f32 %v1074, %v1092
    %v1094 = vpop.f32.mrf.mxu0
    %v1095 = vadd.f32 %v1076, %v1094
    %1096 = vdwg.mxu0
    %1097 = vmatpush.bf16.msra.mxu0 %v740
    %1098 = vmatpush.bf16.msra.mxu0 %v738
    %1099 = vmatpush.bf16.msra.mxu0 %v736
    %1100 = vmatpush.bf16.msra.mxu0 %v734
    %1101 = vmatpush.bf16.msra.mxu0 %v732
    %1102 = vmatpush.bf16.msra.mxu0 %v730
    %1103 = vmatpush.bf16.msra.mxu0 %v728
    %1104 = vmatpush.bf16.msra.mxu0 %v726
    %1105 = vmatmul.bf16.gmra.mxu0 %v286
    %v1106 = vpop.f32.mrf.mxu0
    %v1107 = vadd.f32 %v1088, %v1106
    %v1108 = vpop.f32.mrf.mxu0
    %v1109 = vadd.f32 %v1090, %v1108
    %1110 = vmatmul.bf16.gmra.mxu0 %v293
    %v1111 = vpop.f32.mrf.mxu0
    %v1112 = vadd.f32 %v1093, %v1111
    %v1113 = vpop.f32.mrf.mxu0
    %v1114 = vadd.f32 %v1095, %v1113
    %1115 = vdwg.mxu0
    %1116 = vmatpush.bf16.msra.mxu0 %v756
    %1117 = vmatpush.bf16.msra.mxu0 %v754
    %1118 = vmatpush.bf16.msra.mxu0 %v752
    %1119 = vmatpush.bf16.msra.mxu0 %v750
    %1120 = vmatpush.bf16.msra.mxu0 %v748
    %1121 = vmatpush.bf16.msra.mxu0 %v746
    %1122 = vmatpush.bf16.msra.mxu0 %v744
    %1123 = vmatpush.bf16.msra.mxu0 %v742
    %1124 = vmatmul.bf16.gmra.mxu0 %v287
    %v1125 = vpop.f32.mrf.mxu0
    %v1126 = vadd.f32 %v1107, %v1125
    %v1127 = vpop.f32.mrf.mxu0
    %v1128 = vadd.f32 %v1109, %v1127
    %1129 = vmatmul.bf16.gmra.mxu0 %v294
    %v1130 = vpop.f32.mrf.mxu0
    %v1131 = vadd.f32 %v1112, %v1130
    %v1132 = vpop.f32.mrf.mxu0
    %v1133 = vadd.f32 %v1114, %v1132
    %1134 = vdwg.mxu0
    %v1135 = vmax.f32 %v993, 0.0
    %v1136 = vmax.f32 %v1126, 0.0
    %v1137 = vmax.f32 %v995, 0.0
    %v1138 = vmax.f32 %v1128, 0.0
    %v1139 = vmax.f32 %v998, 0.0
    %v1140 = vmax.f32 %v1131, 0.0
    %v1141 = vmax.f32 %v1000, 0.0
    %v1142 = vmax.f32 %v1133, 0.0
    %v1143 = vpack.c.bf16 %v1137, %v1135
    %v1144 = vpack.c.bf16 %v1138, %v1136
    %v1145 = vpack.c.bf16 %v1141, %v1139
    %v1146 = vpack.c.bf16 %v1142, %v1140
    %v1147 = vld [vmem:[#allocation8] sm:$0xff]
    %v1148 = vld [vmem:[#allocation8 + $0x8] sm:$0xff]
    %v1149 = vld [vmem:[#allocation8 + $0x10] sm:$0xff]
    %v1150 = vld [vmem:[#allocation8 + $0x18] sm:$0xff]
    %v1151 = vld [vmem:[#allocation8 + $0x20] sm:$0xff]
    %v1152 = vld [vmem:[#allocation8 + $0x28] sm:$0xff]
    %v1153 = vld [vmem:[#allocation8 + $0x30] sm:$0xff]
    %v1154 = vld [vmem:[#allocation8 + $0x38] sm:$0xff]
    %v1155 = vld [vmem:[#allocation8 + $0x40] sm:$0xff]
    %v1156 = vld [vmem:[#allocation8 + $0x48] sm:$0xff]
    %v1157 = vld [vmem:[#allocation8 + $0x50] sm:$0xff]
    %v1158 = vld [vmem:[#allocation8 + $0x58] sm:$0xff]
    %v1159 = vld [vmem:[#allocation8 + $0x60] sm:$0xff]
    %v1160 = vld [vmem:[#allocation8 + $0x68] sm:$0xff]
    %v1161 = vld [vmem:[#allocation8 + $0x70] sm:$0xff]
    %v1162 = vld [vmem:[#allocation8 + $0x78] sm:$0xff]
    %v1163 = vld [vmem:[#allocation8 + $0x80] sm:$0xff]
    %v1164 = vld [vmem:[#allocation8 + $0x88] sm:$0xff]
    %v1165 = vld [vmem:[#allocation8 + $0x90] sm:$0xff]
    %v1166 = vld [vmem:[#allocation8 + $0x98] sm:$0xff]
    %v1167 = vld [vmem:[#allocation8 + $0xa0] sm:$0xff]
    %v1168 = vld [vmem:[#allocation8 + $0xa8] sm:$0xff]
    %v1169 = vld [vmem:[#allocation8 + $0xb0] sm:$0xff]
    %v1170 = vld [vmem:[#allocation8 + $0xb8] sm:$0xff]
    %v1171 = vld [vmem:[#allocation8 + $0xc0] sm:$0xff]
    %v1172 = vld [vmem:[#allocation8 + $0xc8] sm:$0xff]
    %v1173 = vld [vmem:[#allocation8 + $0xd0] sm:$0xff]
    %v1174 = vld [vmem:[#allocation8 + $0xd8] sm:$0xff]
    %v1175 = vld [vmem:[#allocation8 + $0xe0] sm:$0xff]
    %v1176 = vld [vmem:[#allocation8 + $0xe8] sm:$0xff]
    %v1177 = vld [vmem:[#allocation8 + $0xf0] sm:$0xff]
    %v1178 = vld [vmem:[#allocation8 + $0xf8] sm:$0xff]
    %v1179 = vld [vmem:[%s4] sm:$0x3]
    %v1181 = vperm.slane %v1179, 0
    %v1182 = vperm.slane %v1179, 1
    %v1217 = vunpack.c.l.b16 %v1147
    %v1218 = vunpack.c.h.b16 %v1147
    %v1219 = vunpack.c.l.b16 %v1148
    %v1220 = vunpack.c.h.b16 %v1148
    %v1221 = vunpack.c.l.b16 %v1149
    %v1222 = vunpack.c.h.b16 %v1149
    %v1223 = vunpack.c.l.b16 %v1150
    %v1224 = vunpack.c.h.b16 %v1150
    %v1225 = vunpack.c.l.b16 %v1151
    %v1226 = vunpack.c.h.b16 %v1151
    %v1227 = vunpack.c.l.b16 %v1152
    %v1228 = vunpack.c.h.b16 %v1152
    %v1229 = vunpack.c.l.b16 %v1153
    %v1230 = vunpack.c.h.b16 %v1153
    %v1231 = vunpack.c.l.b16 %v1154
    %v1232 = vunpack.c.h.b16 %v1154
    %v1233 = vunpack.c.l.b16 %v1155
    %v1234 = vunpack.c.h.b16 %v1155
    %v1235 = vunpack.c.l.b16 %v1156
    %v1236 = vunpack.c.h.b16 %v1156
    %v1237 = vunpack.c.l.b16 %v1157
    %v1238 = vunpack.c.h.b16 %v1157
    %v1239 = vunpack.c.l.b16 %v1158
    %v1240 = vunpack.c.h.b16 %v1158
    %v1241 = vunpack.c.l.b16 %v1159
    %v1242 = vunpack.c.h.b16 %v1159
    %v1243 = vunpack.c.l.b16 %v1160
    %v1244 = vunpack.c.h.b16 %v1160
    %v1245 = vunpack.c.l.b16 %v1161
    %v1246 = vunpack.c.h.b16 %v1161
    %v1247 = vunpack.c.l.b16 %v1162
    %v1248 = vunpack.c.h.b16 %v1162
    %v1249 = vunpack.c.l.b16 %v1163
    %v1250 = vunpack.c.h.b16 %v1163
    %v1251 = vunpack.c.l.b16 %v1164
    %v1252 = vunpack.c.h.b16 %v1164
    %v1253 = vunpack.c.l.b16 %v1165
    %v1254 = vunpack.c.h.b16 %v1165
    %v1255 = vunpack.c.l.b16 %v1166
    %v1256 = vunpack.c.h.b16 %v1166
    %v1257 = vunpack.c.l.b16 %v1167
    %v1258 = vunpack.c.h.b16 %v1167
    %v1259 = vunpack.c.l.b16 %v1168
    %v1260 = vunpack.c.h.b16 %v1168
    %v1261 = vunpack.c.l.b16 %v1169
    %v1262 = vunpack.c.h.b16 %v1169
    %v1263 = vunpack.c.l.b16 %v1170
    %v1264 = vunpack.c.h.b16 %v1170
    %v1265 = vunpack.c.l.b16 %v1171
    %v1266 = vunpack.c.h.b16 %v1171
    %v1267 = vunpack.c.l.b16 %v1172
    %v1268 = vunpack.c.h.b16 %v1172
    %v1269 = vunpack.c.l.b16 %v1173
    %v1270 = vunpack.c.h.b16 %v1173
    %v1271 = vunpack.c.l.b16 %v1174
    %v1272 = vunpack.c.h.b16 %v1174
    %v1273 = vunpack.c.l.b16 %v1175
    %v1274 = vunpack.c.h.b16 %v1175
    %v1275 = vunpack.c.l.b16 %v1176
    %v1276 = vunpack.c.h.b16 %v1176
    %v1277 = vunpack.c.l.b16 %v1177
    %v1278 = vunpack.c.h.b16 %v1177
    %v1279 = vunpack.c.l.b16 %v1178
    %v1280 = vunpack.c.h.b16 %v1178
    %v1281 = vpack.c.b16 %v1219, %v1217
    %v1282 = vpack.c.b16 %v1220, %v1218
    %v1283 = vpack.c.b16 %v1223, %v1221
    %v1284 = vpack.c.b16 %v1224, %v1222
    %v1285 = vpack.c.b16 %v1227, %v1225
    %v1286 = vpack.c.b16 %v1228, %v1226
    %v1287 = vpack.c.b16 %v1231, %v1229
    %v1288 = vpack.c.b16 %v1232, %v1230
    %v1289 = vpack.c.b16 %v1235, %v1233
    %v1290 = vpack.c.b16 %v1236, %v1234
    %v1291 = vpack.c.b16 %v1239, %v1237
    %v1292 = vpack.c.b16 %v1240, %v1238
    %v1293 = vpack.c.b16 %v1243, %v1241
    %v1294 = vpack.c.b16 %v1244, %v1242
    %v1295 = vpack.c.b16 %v1247, %v1245
    %v1296 = vpack.c.b16 %v1248, %v1246
    %v1297 = vpack.c.b16 %v1251, %v1249
    %v1298 = vpack.c.b16 %v1252, %v1250
    %v1299 = vpack.c.b16 %v1255, %v1253
    %v1300 = vpack.c.b16 %v1256, %v1254
    %v1301 = vpack.c.b16 %v1259, %v1257
    %v1302 = vpack.c.b16 %v1260, %v1258
    %v1303 = vpack.c.b16 %v1263, %v1261
    %v1304 = vpack.c.b16 %v1264, %v1262
    %v1305 = vpack.c.b16 %v1267, %v1265
    %v1306 = vpack.c.b16 %v1268, %v1266
    %v1307 = vpack.c.b16 %v1271, %v1269
    %v1308 = vpack.c.b16 %v1272, %v1270
    %v1309 = vpack.c.b16 %v1275, %v1273
    %v1310 = vpack.c.b16 %v1276, %v1274
    %v1311 = vpack.c.b16 %v1279, %v1277
    %v1312 = vpack.c.b16 %v1280, %v1278
    %1345 = vmatpush.bf16.msra.mxu0 %v1295
    %1346 = vmatpush.bf16.msra.mxu0 %v1293
    %1347 = vmatpush.bf16.msra.mxu0 %v1291
    %1348 = vmatpush.bf16.msra.mxu0 %v1289
    %1349 = vmatpush.bf16.msra.mxu0 %v1287
    %1350 = vmatpush.bf16.msra.mxu0 %v1285
    %1351 = vmatpush.bf16.msra.mxu0 %v1283
    %1352 = vmatpush.bf16.msra.mxu0 %v1281
    %1353 = vmatmul.bf16.gmra.mxu0 %v1143
    %v1354 = vpop.f32.mrf.mxu0
    %v1355 = vadd.f32 %v1181, %v1354
    %v1356 = vpop.f32.mrf.mxu0
    %v1357 = vadd.f32 %v1181, %v1356
    %1358 = vmatmul.bf16.gmra.mxu0 %v1145
    %v1359 = vpop.f32.mrf.mxu0
    %v1360 = vadd.f32 %v1181, %v1359
    %v1361 = vpop.f32.mrf.mxu0
    %v1362 = vadd.f32 %v1181, %v1361
    %1363 = vdwg.mxu0
    %1364 = vmatpush.bf16.msra.mxu0 %v1311
    %1365 = vmatpush.bf16.msra.mxu0 %v1309
    %1366 = vmatpush.bf16.msra.mxu0 %v1307
    %1367 = vmatpush.bf16.msra.mxu0 %v1305
    %1368 = vmatpush.bf16.msra.mxu0 %v1303
    %1369 = vmatpush.bf16.msra.mxu0 %v1301
    %1370 = vmatpush.bf16.msra.mxu0 %v1299
    %1371 = vmatpush.bf16.msra.mxu0 %v1297
    %1372 = vmatmul.bf16.gmra.mxu0 %v1144
    %v1373 = vpop.f32.mrf.mxu0
    %v1374 = vadd.f32 %v1355, %v1373
    %v1375 = vpop.f32.mrf.mxu0
    %v1376 = vadd.f32 %v1357, %v1375
    %1377 = vmatmul.bf16.gmra.mxu0 %v1146
    %v1378 = vpop.f32.mrf.mxu0
    %v1379 = vadd.f32 %v1360, %v1378
    %v1380 = vpop.f32.mrf.mxu0
    %v1381 = vadd.f32 %v1362, %v1380
    %1382 = vdwg.mxu0
    %1383 = vmatpush.bf16.msra.mxu0 %v1296
    %1384 = vmatpush.bf16.msra.mxu0 %v1294
    %1385 = vmatpush.bf16.msra.mxu0 %v1292
    %1386 = vmatpush.bf16.msra.mxu0 %v1290
    %1387 = vmatpush.bf16.msra.mxu0 %v1288
    %1388 = vmatpush.bf16.msra.mxu0 %v1286
    %1389 = vmatpush.bf16.msra.mxu0 %v1284
    %1390 = vmatpush.bf16.msra.mxu0 %v1282
    %1391 = vmatmul.bf16.gmra.mxu0 %v1143
    %v1392 = vpop.f32.mrf.mxu0
    %v1393 = vadd.f32 %v1182, %v1392
    %v1394 = vpop.f32.mrf.mxu0
    %v1395 = vadd.f32 %v1182, %v1394
    %1396 = vmatmul.bf16.gmra.mxu0 %v1145
    %v1397 = vpop.f32.mrf.mxu0
    %v1398 = vadd.f32 %v1182, %v1397
    %v1399 = vpop.f32.mrf.mxu0
    %v1400 = vadd.f32 %v1182, %v1399
    %1401 = vdwg.mxu0
    %1402 = vmatpush.bf16.msra.mxu0 %v1312
    %1403 = vmatpush.bf16.msra.mxu0 %v1310
    %1404 = vmatpush.bf16.msra.mxu0 %v1308
    %1405 = vmatpush.bf16.msra.mxu0 %v1306
    %1406 = vmatpush.bf16.msra.mxu0 %v1304
    %1407 = vmatpush.bf16.msra.mxu0 %v1302
    %1408 = vmatpush.bf16.msra.mxu0 %v1300
    %1409 = vmatpush.bf16.msra.mxu0 %v1298
    %1410 = vmatmul.bf16.gmra.mxu0 %v1144
    %v1411 = vpop.f32.mrf.mxu0
    %v1412 = vadd.f32 %v1393, %v1411
    %v1413 = vpop.f32.mrf.mxu0
    %v1414 = vadd.f32 %v1395, %v1413
    %1415 = vmatmul.bf16.gmra.mxu0 %v1146
    %v1416 = vpop.f32.mrf.mxu0
    %v1417 = vadd.f32 %v1398, %v1416
    %v1418 = vpop.f32.mrf.mxu0
    %v1419 = vadd.f32 %v1400, %v1418
    %1420 = vdwg.mxu0
    %v1421 = vmax.f32 %v1374, 0.0
    %v1422 = vmax.f32 %v1412, 0.0
    %v1423 = vmax.f32 %v1376, 0.0
    %v1424 = vmax.f32 %v1414, 0.0
    %v1425 = vmax.f32 %v1379, 0.0
    %v1426 = vmax.f32 %v1417, 0.0
    %v1427 = vmax.f32 %v1381, 0.0
    %v1428 = vmax.f32 %v1419, 0.0
    %v1429 = vpack.c.bf16 %v1423, %v1421
    %v1430 = vpack.c.bf16 %v1424, %v1422
    %v1431 = vpack.c.bf16 %v1427, %v1425
    %v1432 = vpack.c.bf16 %v1428, %v1426
    %v1433 = vld [vmem:[#allocation10] sm:$0xf]
    %v1434 = vld [vmem:[#allocation10 + $0x4] sm:$0xf]
    %v1435 = vld [vmem:[#allocation10 + $0x8] sm:$0xf]
    %v1436 = vld [vmem:[#allocation10 + $0xc] sm:$0xf]
    %v1437 = vld [vmem:[#allocation10 + $0x10] sm:$0xf]
    %v1438 = vld [vmem:[#allocation10 + $0x14] sm:$0xf]
    %v1439 = vld [vmem:[#allocation10 + $0x18] sm:$0xf]
    %v1440 = vld [vmem:[#allocation10 + $0x1c] sm:$0xf]
    %v1441 = vld [vmem:[#allocation10 + $0x20] sm:$0xf]
    %v1442 = vld [vmem:[#allocation10 + $0x24] sm:$0xf]
    %v1443 = vld [vmem:[#allocation10 + $0x28] sm:$0xf]
    %v1444 = vld [vmem:[#allocation10 + $0x2c] sm:$0xf]
    %v1445 = vld [vmem:[#allocation10 + $0x30] sm:$0xf]
    %v1446 = vld [vmem:[#allocation10 + $0x34] sm:$0xf]
    %v1447 = vld [vmem:[#allocation10 + $0x38] sm:$0xf]
    %v1448 = vld [vmem:[#allocation10 + $0x3c] sm:$0xf]
    %v1449 = vld [vmem:[#allocation10 + $0x40] sm:$0xf]
    %v1450 = vld [vmem:[#allocation10 + $0x44] sm:$0xf]
    %v1451 = vld [vmem:[#allocation10 + $0x48] sm:$0xf]
    %v1452 = vld [vmem:[#allocation10 + $0x4c] sm:$0xf]
    %v1453 = vld [vmem:[#allocation10 + $0x50] sm:$0xf]
    %v1454 = vld [vmem:[#allocation10 + $0x54] sm:$0xf]
    %v1455 = vld [vmem:[#allocation10 + $0x58] sm:$0xf]
    %v1456 = vld [vmem:[#allocation10 + $0x5c] sm:$0xf]
    %v1457 = vld [vmem:[#allocation10 + $0x60] sm:$0xf]
    %v1458 = vld [vmem:[#allocation10 + $0x64] sm:$0xf]
    %v1459 = vld [vmem:[#allocation10 + $0x68] sm:$0xf]
    %v1460 = vld [vmem:[#allocation10 + $0x6c] sm:$0xf]
    %v1461 = vld [vmem:[#allocation10 + $0x70] sm:$0xf]
    %v1462 = vld [vmem:[#allocation10 + $0x74] sm:$0xf]
    %v1463 = vld [vmem:[#allocation10 + $0x78] sm:$0xf]
    %v1464 = vld [vmem:[#allocation10 + $0x7c] sm:$0xf]
    %v1465 = vld [vmem:[%s6] sm:$0x1]
    %v1467 = vperm.slane %v1465, 0
    %v1501 = vunpack.c.l.b16 %v1433
    %v1502 = vunpack.c.l.b16 %v1434
    %v1503 = vunpack.c.l.b16 %v1435
    %v1504 = vunpack.c.l.b16 %v1436
    %v1505 = vunpack.c.l.b16 %v1437
    %v1506 = vunpack.c.l.b16 %v1438
    %v1507 = vunpack.c.l.b16 %v1439
    %v1508 = vunpack.c.l.b16 %v1440
    %v1509 = vunpack.c.l.b16 %v1441
    %v1510 = vunpack.c.l.b16 %v1442
    %v1511 = vunpack.c.l.b16 %v1443
    %v1512 = vunpack.c.l.b16 %v1444
    %v1513 = vunpack.c.l.b16 %v1445
    %v1514 = vunpack.c.l.b16 %v1446
    %v1515 = vunpack.c.l.b16 %v1447
    %v1516 = vunpack.c.l.b16 %v1448
    %v1517 = vunpack.c.l.b16 %v1449
    %v1518 = vunpack.c.l.b16 %v1450
    %v1519 = vunpack.c.l.b16 %v1451
    %v1520 = vunpack.c.l.b16 %v1452
    %v1521 = vunpack.c.l.b16 %v1453
    %v1522 = vunpack.c.l.b16 %v1454
    %v1523 = vunpack.c.l.b16 %v1455
    %v1524 = vunpack.c.l.b16 %v1456
    %v1525 = vunpack.c.l.b16 %v1457
    %v1526 = vunpack.c.l.b16 %v1458
    %v1527 = vunpack.c.l.b16 %v1459
    %v1528 = vunpack.c.l.b16 %v1460
    %v1529 = vunpack.c.l.b16 %v1461
    %v1530 = vunpack.c.l.b16 %v1462
    %v1531 = vunpack.c.l.b16 %v1463
    %v1532 = vunpack.c.l.b16 %v1464
    %v1533 = vpack.c.b16 %v1502, %v1501
    %v1534 = vpack.c.b16 %v1504, %v1503
    %v1535 = vpack.c.b16 %v1506, %v1505
    %v1536 = vpack.c.b16 %v1508, %v1507
    %v1537 = vpack.c.b16 %v1510, %v1509
    %v1538 = vpack.c.b16 %v1512, %v1511
    %v1539 = vpack.c.b16 %v1514, %v1513
    %v1540 = vpack.c.b16 %v1516, %v1515
    %v1541 = vpack.c.b16 %v1518, %v1517
    %v1542 = vpack.c.b16 %v1520, %v1519
    %v1543 = vpack.c.b16 %v1522, %v1521
    %v1544 = vpack.c.b16 %v1524, %v1523
    %v1545 = vpack.c.b16 %v1526, %v1525
    %v1546 = vpack.c.b16 %v1528, %v1527
    %v1547 = vpack.c.b16 %v1530, %v1529
    %v1548 = vpack.c.b16 %v1532, %v1531
    %1565 = vmatpush.bf16.msra.mxu0 %v1540
    %1566 = vmatpush.bf16.msra.mxu0 %v1539
    %1567 = vmatpush.bf16.msra.mxu0 %v1538
    %1568 = vmatpush.bf16.msra.mxu0 %v1537
    %1569 = vmatpush.bf16.msra.mxu0 %v1536
    %1570 = vmatpush.bf16.msra.mxu0 %v1535
    %1571 = vmatpush.bf16.msra.mxu0 %v1534
    %1572 = vmatpush.bf16.msra.mxu0 %v1533
    %1573 = vmatmul.bf16.gmra.mxu0 %v1429
    %v1574 = vpop.f32.mrf.mxu0
    %v1575 = vadd.f32 %v1467, %v1574
    %v1576 = vpop.f32.mrf.mxu0
    %v1577 = vadd.f32 %v1467, %v1576
    %1578 = vmatmul.bf16.gmra.mxu0 %v1431
    %v1579 = vpop.f32.mrf.mxu0
    %v1580 = vadd.f32 %v1467, %v1579
    %v1581 = vpop.f32.mrf.mxu0
    %v1582 = vadd.f32 %v1467, %v1581
    %1583 = vdwg.mxu0
    %1584 = vmatpush.bf16.msra.mxu0 %v1548
    %1585 = vmatpush.bf16.msra.mxu0 %v1547
    %1586 = vmatpush.bf16.msra.mxu0 %v1546
    %1587 = vmatpush.bf16.msra.mxu0 %v1545
    %1588 = vmatpush.bf16.msra.mxu0 %v1544
    %1589 = vmatpush.bf16.msra.mxu0 %v1543
    %1590 = vmatpush.bf16.msra.mxu0 %v1542
    %1591 = vmatpush.bf16.msra.mxu0 %v1541
    %1592 = vmatmul.bf16.gmra.mxu0 %v1430
    %v1593 = vpop.f32.mrf.mxu0
    %v1594 = vadd.f32 %v1575, %v1593
    %v1595 = vpop.f32.mrf.mxu0
    %v1596 = vadd.f32 %v1577, %v1595
    %1597 = vmatmul.bf16.gmra.mxu0 %v1432
    %v1598 = vpop.f32.mrf.mxu0
    %v1599 = vadd.f32 %v1580, %v1598
    %v1600 = vpop.f32.mrf.mxu0
    %v1601 = vadd.f32 %v1582, %v1600
    %1602 = vdwg.mxu0
    %v1603 = vmax.f32 %v1594, 0.0
    %v1604 = vmax.f32 %v1596, 0.0
    %v1605 = vmax.f32 %v1599, 0.0
    %v1606 = vmax.f32 %v1601, 0.0
    %1607 = vst [vmem:[#allocation11] sm:$0xff] %v1603
    %1608 = vst [vmem:[#allocation11 + $0x8] sm:$0xff] %v1604
    %1609 = vst [vmem:[#allocation11 + $0x10] sm:$0xff] %v1605
    %1610 = vst [vmem:[#allocation11 + $0x18] sm:$0xff] %v1606
    // Predicated region
    $region50: #{tpu_custom_call.1} parent=1 // pred_check
      _
    $region51: #{tpu_custom_call.1} parent=1 // pred_check_branch
      %1612 = sbr.rel (0) target = $region53
    $region52: #{tpu_custom_call.1} parent=1 // pred_region
      %1614 = vsyncadd [#allocation4], 0
      %s1615 = sshll.u32 [#allocation11], 4
      %s1616 = int_to_ptr.vmem [resolvable:$true] %s1615
      %s1617 = sshll.u32 %s7, 4
      %s1618 = int_to_ptr.hbm [resolvable:$true] %s1617
      %1623 = dma.vmem_to_hbm [thread:$0]  %s1616, 512, %s1618, [#allocation4], 128, 128, 8
    $region53: #{tpu_custom_call.1} parent=1 // pred_fallthru
      _
    // Predicated region
    $region54: #{tpu_custom_call.1} parent=1 // pred_check
      _
    $region55: #{tpu_custom_call.1} parent=1 // pred_check_branch
      %1625 = sbr.rel (0) target = $region57
    $region56: #{tpu_custom_call.1} parent=1 // pred_region
      %1627 = dma.done [#allocation4], 512
    $region57: #{tpu_custom_call.1} parent=1 // pred_fallthru
      _
    %1628 = vsyncpa [#allocation3], 1
    %1629 = vsyncpa [#allocation6], 1
    %1630 = vsyncpa [#allocation9], 1
    %1631 = vsyncpa [#allocation4], 1

</llo_original>
